<compile_context>
chip_gen: v6e
topology: v6e:2x2x1
jax: 0.10.0
libtpu: 0.0.40
codegen_flags: <defaults>
</compile_context>

<pallas_src>
import functools

import numpy as np

import jax
import jax.numpy as jnp
from jax.experimental import pallas as pl
from jax.experimental.pallas import tpu as pltpu


def _quantize_kernel(num_bins, v_min, v_max, bin_w, inv_bin_w,
                     x_ref, idx_ref, xhat_ref):
    """Element-wise uniform quantisation of one VMEM tile; constants are Python floats."""
    x = x_ref[...].astype(jnp.float32)        # upcast in-kernel: free under the mem-bound regime
    xc = jnp.clip(x, v_min, v_max)

    # Candidate count of edges strictly below xc (correct up to +/-1 from fp rounding).
    c = jnp.ceil((xc - v_min) * inv_bin_w)

    # Exact correction against the two neighbouring edges edges[c-1], edges[c].
    e_hi = v_min + c * bin_w                  # == edges[c]
    e_lo = e_hi - bin_w                       # == edges[c-1]
    count = (c - 1.0) \
        + (e_lo < xc).astype(jnp.float32) \
        + (e_hi < xc).astype(jnp.float32)

    idx_f = jnp.clip(count - 1.0, 0.0, float(num_bins - 1))
    x_hat = v_min + (idx_f + 0.5) * bin_w     # == centres[idx] (<= 1 ulp vs linspace midpoints)

    idx_ref[...] = idx_f.astype(jnp.int32).astype(idx_ref.dtype)
    xhat_ref[...] = x_hat.astype(xhat_ref.dtype)


_LANE_CANDIDATES = (1024, 512, 256, 128)      # lane-dense widths (multiples of 128)


def _target_block_elems():
    """Per-generation block sizing (elements of the f32 working set per buffer)."""
    try:
        kind = jax.devices()[0].device_kind.lower()
    except Exception:  # pragma: no cover - defensive; default is v5e-safe
        kind = ""
    if "v6" in kind or "v7" in kind:
        return 1024 * 1024     # ~4 MiB f32/buffer; fits 32 MiB default scoped VMEM (v6e/v7x)
    return 512 * 1024          # ~2 MiB f32/buffer; safe under v5e's 16 MiB default scoped VMEM


def _choose_block_rows(rows, lane):
    """Pick block_rows (multiple of 32, or full extent) and guarantee >=2 grid steps
    whenever rows >= 64 so both v7x TensorCores get work under the "parallel" grid axis."""
    target_rows = max(32, _target_block_elems() // lane)   # multiple of 32 for all lane choices
    if rows > target_rows:
        return target_rows                                  # grid >= 2 automatically
    if rows >= 64:
        half = int(pl.cdiv(rows, 2))
        return ((half + 31) // 32) * 32                     # two (roughly) balanced blocks
    return rows                                             # single full-extent block (legal)


def uniform_quantize(x, num_bins, v_min, v_max, *, idx_dtype=None, xhat_dtype=None):
    """Pallas implementation of UniformQuantizer.forward.

    Returns (idx, x_hat) with x's shape. idx defaults to the narrowest signed int that holds
    num_bins-1 (torch.bucketize returns int64; pass idx_dtype=jnp.int32/int64 semantics if a
    caller needs dtype parity). x_hat defaults to x's dtype.
    """
    assert num_bins > 1, "Need at least two bins"
    v_min = float(v_min)
    v_max = float(v_max)
    bin_w = (v_max - v_min) / num_bins
    inv_bin_w = 1.0 / bin_w

    if idx_dtype is None:
        if num_bins <= 128:
            idx_dtype = jnp.int8
        elif num_bins <= 32768:
            idx_dtype = jnp.int16
        else:
            idx_dtype = jnp.int32
    if xhat_dtype is None:
        xhat_dtype = x.dtype

    orig_shape = x.shape
    flat = x.reshape(-1)                      # native dtype; upcast happens inside the kernel
    total = flat.size

    # Lane-dense 2-D slab; prefer a lane width that divides the element count so no host-side
    # pad / output-slice HBM passes are needed (true for all NCHW-with-spatial>=16 shapes).
    lane = next((c for c in _LANE_CANDIDATES if total % c == 0), 128)
    needs_pad = total % lane != 0
    if needs_pad:
        # Rare fallback (total not a multiple of 128): pad < 128 elements just to reshape.
        flat = jnp.pad(flat, (0, lane - total % lane), constant_values=v_min)
    rows = flat.size // lane
    x2d = flat.reshape(rows, lane)

    block_rows = _choose_block_rows(rows, lane)
    grid_rows = int(pl.cdiv(rows, block_rows))     # ragged last block handled by Pallas

    kernel = functools.partial(_quantize_kernel, num_bins, v_min, v_max, bin_w, inv_bin_w)

    n = rows * lane
    cost = pl.CostEstimate(
        flops=10 * n,
        transcendentals=0,
        bytes_accessed=n * (x2d.dtype.itemsize
                            + np.dtype(idx_dtype).itemsize
                            + np.dtype(xhat_dtype).itemsize),
    )

    idx2d, xhat2d = pl.pallas_call(
        kernel,
        out_shape=(
            jax.ShapeDtypeStruct((rows, lane), idx_dtype),
            jax.ShapeDtypeStruct((rows, lane), xhat_dtype),
        ),
        grid=(grid_rows,),
        in_specs=[pl.BlockSpec((block_rows, lane), lambda i: (i, 0))],
        out_specs=(
            pl.BlockSpec((block_rows, lane), lambda i: (i, 0)),
            pl.BlockSpec((block_rows, lane), lambda i: (i, 0)),
        ),
        compiler_params=pltpu.CompilerParams(dimension_semantics=("parallel",)),
        cost_estimate=cost,
    )(x2d)

    if needs_pad:
        idx = idx2d.reshape(-1)[:total].reshape(orig_shape)
        x_hat = xhat2d.reshape(-1)[:total].reshape(orig_shape)
    else:
        idx = idx2d.reshape(orig_shape)
        x_hat = xhat2d.reshape(orig_shape)
    return idx, x_hat  # NOTE: idx is a narrow int (torch.bucketize yields int64)


def _reference(x, num_bins, v_min, v_max):
    """Pure-JAX reference faithful to the PyTorch module."""
    edges = jnp.linspace(v_min, v_max, num_bins + 1, dtype=jnp.float32)
    centres = (edges[:-1] + edges[1:]) * 0.5
    xc = jnp.clip(x.astype(jnp.float32), v_min, v_max)
    idx = jnp.searchsorted(edges, xc, side="left") - 1   # == torch.bucketize(right=False) - 1
    idx = jnp.clip(idx, 0, num_bins - 1)
    return idx.astype(jnp.int32), centres[idx]


if __name__ == "__main__":
    key = jax.random.PRNGKey(0)
    num_bins, v_min, v_max = 16, -1.0, 1.0

    # Module-style input: NCHW activations (e.g. DCT coefficients), small shape.
    x = jax.random.normal(key, (2, 4, 16, 16), dtype=jnp.float32) * 0.7
    # Include exact edge values to exercise bucketize boundary semantics.
    x = x.at[0, 0, 0, 0].set(v_min).at[0, 0, 0, 1].set(v_max).at[0, 0, 0, 2].set(0.0)

    idx, x_hat = uniform_quantize(x, num_bins, v_min, v_max)
    jax.block_until_ready((idx, x_hat))

    idx_ref, x_hat_ref = _reference(x, num_bins, v_min, v_max)
    assert idx.shape == x.shape and x_hat.shape == x.shape
    assert (idx.astype(jnp.int32) == idx_ref).all(), "index mismatch vs reference"
    assert jnp.allclose(x_hat.astype(jnp.float32), x_hat_ref, atol=1e-6), "x_hat mismatch vs reference"

    print("KERNEL_OK")
</pallas_src>

<mosaic_0001>
module attributes {stable_mosaic.version = 11 : i64} {
  func.func @_quantize_kernel(%arg0: i32, %arg1: memref<2x1024xf32, #tpu.memory_space<vmem>>, %arg2: memref<2x1024xi8, #tpu.memory_space<vmem>>, %arg3: memref<2x1024xf32, #tpu.memory_space<vmem>>) attributes {dimension_semantics = [#tpu.dimension_semantics<parallel>], iteration_bounds = array<i64: 1>, scalar_prefetch = 0 : i64, scratch_operands = 0 : i64, tpu.core_type = #tpu.core_type<tc>, window_params = [{transform_indices = @transform_0, window_bounds = array<i64: 2, 1024>}, {transform_indices = @transform_1, window_bounds = array<i64: 2, 1024>}, {transform_indices = @transform_2, window_bounds = array<i64: 2, 1024>}]} {
    %c0 = arith.constant 0 : index
    %c0_0 = arith.constant 0 : index
    %0 = vector.load %arg1[%c0, %c0_0] : memref<2x1024xf32, #tpu.memory_space<vmem>>, vector<2x1024xf32>
    %cst = arith.constant -1.000000e+00 : f32
    %cst_1 = arith.constant 1.000000e+00 : f32
    %1 = vector.broadcast %cst : f32 to vector<2x1024xf32>
    %2 = arith.maximumf %1, %0 : vector<2x1024xf32>
    %3 = vector.broadcast %cst_1 : f32 to vector<2x1024xf32>
    %4 = arith.minimumf %3, %2 : vector<2x1024xf32>
    %cst_2 = arith.constant -1.000000e+00 : f32
    %5 = vector.broadcast %cst_2 : f32 to vector<2x1024xf32>
    %6 = arith.subf %4, %5 : vector<2x1024xf32>
    %cst_3 = arith.constant 8.000000e+00 : f32
    %7 = vector.broadcast %cst_3 : f32 to vector<2x1024xf32>
    %8 = arith.mulf %6, %7 : vector<2x1024xf32>
    %9 = math.ceil %8 : vector<2x1024xf32>
    %cst_4 = arith.constant 1.250000e-01 : f32
    %10 = vector.broadcast %cst_4 : f32 to vector<2x1024xf32>
    %11 = arith.mulf %9, %10 : vector<2x1024xf32>
    %cst_5 = arith.constant -1.000000e+00 : f32
    %12 = vector.broadcast %cst_5 : f32 to vector<2x1024xf32>
    %13 = arith.addf %12, %11 : vector<2x1024xf32>
    %cst_6 = arith.constant 1.250000e-01 : f32
    %14 = vector.broadcast %cst_6 : f32 to vector<2x1024xf32>
    %15 = arith.subf %13, %14 : vector<2x1024xf32>
    %cst_7 = arith.constant 1.000000e+00 : f32
    %16 = vector.broadcast %cst_7 : f32 to vector<2x1024xf32>
    %17 = arith.subf %9, %16 : vector<2x1024xf32>
    %18 = arith.cmpf olt, %15, %4 : vector<2x1024xf32>
    %19 = arith.extui %18 : vector<2x1024xi1> to vector<2x1024xi32>
    %20 = arith.sitofp %19 : vector<2x1024xi32> to vector<2x1024xf32>
    %21 = arith.addf %17, %20 : vector<2x1024xf32>
    %22 = arith.cmpf olt, %13, %4 : vector<2x1024xf32>
    %23 = arith.extui %22 : vector<2x1024xi1> to vector<2x1024xi32>
    %24 = arith.sitofp %23 : vector<2x1024xi32> to vector<2x1024xf32>
    %25 = arith.addf %21, %24 : vector<2x1024xf32>
    %cst_8 = arith.constant 1.000000e+00 : f32
    %26 = vector.broadcast %cst_8 : f32 to vector<2x1024xf32>
    %27 = arith.subf %25, %26 : vector<2x1024xf32>
    %cst_9 = arith.constant 0.000000e+00 : f32
    %cst_10 = arith.constant 1.500000e+01 : f32
    %28 = vector.broadcast %cst_9 : f32 to vector<2x1024xf32>
    %29 = arith.maximumf %28, %27 : vector<2x1024xf32>
    %30 = vector.broadcast %cst_10 : f32 to vector<2x1024xf32>
    %31 = arith.minimumf %30, %29 : vector<2x1024xf32>
    %cst_11 = arith.constant 5.000000e-01 : f32
    %32 = vector.broadcast %cst_11 : f32 to vector<2x1024xf32>
    %33 = arith.addf %31, %32 : vector<2x1024xf32>
    %cst_12 = arith.constant 1.250000e-01 : f32
    %34 = vector.broadcast %cst_12 : f32 to vector<2x1024xf32>
    %35 = arith.mulf %33, %34 : vector<2x1024xf32>
    %cst_13 = arith.constant -1.000000e+00 : f32
    %36 = vector.broadcast %cst_13 : f32 to vector<2x1024xf32>
    %37 = arith.addf %36, %35 : vector<2x1024xf32>
    %38 = arith.fptosi %31 : vector<2x1024xf32> to vector<2x1024xi32>
    %39 = arith.trunci %38 : vector<2x1024xi32> to vector<2x1024xi8>
    %c0_14 = arith.constant 0 : index
    %c0_15 = arith.constant 0 : index
    %40 = vector.load %arg2[%c0_14, %c0_15] : memref<2x1024xi8, #tpu.memory_space<vmem>>, vector<2x1024xi8>
    tpu.vector_store %arg2[%c0_14, %c0_15], %39 {strides = array<i32>} : memref<2x1024xi8, #tpu.memory_space<vmem>>, vector<2x1024xi8>,
    %c0_16 = arith.constant 0 : index
    %c0_17 = arith.constant 0 : index
    %41 = vector.load %arg3[%c0_16, %c0_17] : memref<2x1024xf32, #tpu.memory_space<vmem>>, vector<2x1024xf32>
    tpu.vector_store %arg3[%c0_16, %c0_17], %37 {strides = array<i32>} : memref<2x1024xf32, #tpu.memory_space<vmem>>, vector<2x1024xf32>,
    return
  }
  func.func @transform_0(%arg0: i32) -> (i32, i32) {
    %c0_i32 = arith.constant 0 : i32
    %c0_i32_0 = arith.constant 0 : i32
    return %arg0, %c0_i32 : i32, i32
  }
  func.func @transform_1(%arg0: i32) -> (i32, i32) {
    %c0_i32 = arith.constant 0 : i32
    %c0_i32_0 = arith.constant 0 : i32
    return %arg0, %c0_i32 : i32, i32
  }
  func.func @transform_2(%arg0: i32) -> (i32, i32) {
    %c0_i32 = arith.constant 0 : i32
    %c0_i32_0 = arith.constant 0 : i32
    return %arg0, %c0_i32 : i32, i32
  }
}

</mosaic_0001>

<llo_original>
// kernel: tpu_custom_call.1
$region0: #{tpu_custom_call.1}
  #allocation0 [shape = 'u32[]', space=smem, size = 0x4, offset = 0x4, fixed_abs, tag = 'smem constant byte address 0x4 - core index']
  #allocation1 [shape = 'u32[144,128]{1,0:T(1,128)}', space=vmem, size = 0x12000, scoped, tag = 'internal scratch']
  %s0 = inlined_call_operand.hbm [shape: f32[2,1024], index: 0, kind: input, shape index: {}]
  %s1 = inlined_call_operand.hbm [shape: s8[2,1024], index: 1, kind: output, shape index: {0}]
  %s2 = inlined_call_operand.hbm [shape: f32[2,1024], index: 2, kind: output, shape index: {1}]
  %3 = xla_tuple %s1, %s2
  %s4 = sld [smem:[#allocation0]]
  $region26: #{tpu_custom_call.1} parent=0
    _
  %s6 = ssub.s32 1, %s4
  %s7 = scalar_select 0, %s6, %s4
  $region1: #{tpu_custom_call.1} parent=0
    #allocation2 [shape = 'u8[8192]{0}', space=vmem, size = 0x2000, scoped, tag = 'input window, operand 0, single buffered']
    #allocation3 [shape = 's32[1]{0}', space=sflag, size = 0x4, scoped, tag = 'scoped memory for tpu_custom_call.1']
    #allocation4 [shape = 's32[1]{0}', space=sflag, size = 0x4, scoped, tag = 'scoped memory for tpu_custom_call.1']
    #allocation5 [shape = 'u8[4096]{0}', space=vmem, size = 0x1000, scoped, tag = 'output window, operand 0, single buffered']
    #allocation6 [shape = 'u8[8192]{0}', space=vmem, size = 0x2000, scoped, tag = 'output window, operand 1, single buffered']
    #allocation7 [shape = 's32[1]{0}', space=sflag, size = 0x4, scoped, tag = 'scoped memory for tpu_custom_call.1']
    %8 = vsyncpa [#allocation3], 0
    %9 = vsyncpa [#allocation4], 0
    %10 = vsyncpa [#allocation7], 0
    // Predicated region
    $region2: #{tpu_custom_call.1} parent=1 // pred_check
      _
    $region3: #{tpu_custom_call.1} parent=1 // pred_check_branch
      %12 = sbr.rel (0) target = $region5
    $region4: #{tpu_custom_call.1} parent=1 // pred_region
      %s14 = ssub.s32 256, 256
      %15 = vsyncadd [#allocation3], %s14
      %s17 = sshll.u32 [#allocation2], 4
      %s18 = int_to_ptr.vmem [resolvable:$true] %s17
      %20 = dma.hbm_to_vmem [thread:$0]  %s0, 256, %s18, [#allocation3]
    $region5: #{tpu_custom_call.1} parent=1 // pred_fallthru
      _
    // Predicated region
    $region6: #{tpu_custom_call.1} parent=1 // pred_check
      _
    $region7: #{tpu_custom_call.1} parent=1 // pred_check_branch
      %22 = sbr.rel (0) target = $region9
    $region8: #{tpu_custom_call.1} parent=1 // pred_region
      %23 = dma.done [#allocation3], 256
    $region9: #{tpu_custom_call.1} parent=1 // pred_fallthru
      _
    %v24 = vld [vmem:[#allocation2] sm:$0xff]
    %v25 = vld [vmem:[#allocation2 + $0x8] sm:$0xff]
    %v26 = vmax.f32 %v24, -1.0
    %v27 = vmax.f32 %v25, -1.0
    %v28 = vmin.f32 %v26, 1.0
    %v29 = vmin.f32 %v27, 1.0
    %v30 = vsub.f32 %v28, -1.0
    %v31 = vsub.f32 %v29, -1.0
    %v32 = vmul.f32 %v30, 8.0
    %v33 = vmul.f32 %v31, 8.0
    %v34 = vceil.f32 %v32
    %v35 = vceil.f32 %v33
    %v36 = vmul.f32 %v34, 0.125
    %v37 = vmul.f32 %v35, 0.125
    %v38 = vadd.f32 %v36, -1.0
    %v39 = vadd.f32 %v37, -1.0
    %v40 = vsub.f32 %v38, 0.125
    %v41 = vsub.f32 %v39, 0.125
    %v42 = vsub.f32 %v34, 1.0
    %v43 = vsub.f32 %v35, 1.0
    %vm44 = vcmp.lt.f32.partialorder %v40, %v28
    %vm45 = vcmp.lt.f32.partialorder %v41, %v29
    %v46 = vsel %vm44, 1, 0
    %v47 = vsel %vm45, 1, 0
    %v48 = vcvt.s32.f32 %v46
    %v49 = vcvt.s32.f32 %v47
    %v50 = vadd.f32 %v42, %v48
    %v51 = vadd.f32 %v43, %v49
    %vm52 = vcmp.lt.f32.partialorder %v38, %v28
    %vm53 = vcmp.lt.f32.partialorder %v39, %v29
    %v54 = vsel %vm52, 1, 0
    %v55 = vsel %vm53, 1, 0
    %v56 = vcvt.s32.f32 %v54
    %v57 = vcvt.s32.f32 %v55
    %v58 = vadd.f32 %v50, %v56
    %v59 = vadd.f32 %v51, %v57
    %v60 = vsub.f32 %v58, 1.0
    %v61 = vsub.f32 %v59, 1.0
    %v62 = vmax.f32 %v60, 0.0
    %v63 = vmax.f32 %v61, 0.0
    %v64 = vmin.f32 %v62, 15.0
    %v65 = vmin.f32 %v63, 15.0
    %v66 = vadd.f32 %v64, 0.5
    %v67 = vadd.f32 %v65, 0.5
    %v68 = vmul.f32 %v66, 0.125
    %v69 = vmul.f32 %v67, 0.125
    %v70 = vadd.f32 %v68, -1.0
    %v71 = vadd.f32 %v69, -1.0
    %v72 = vcvt.f32.s32.to.zero.pseudo %v64
    %v73 = vcvt.f32.s32.to.zero.pseudo %v65
    %v74 = vcombine.high %v72, %v72
    %v76 = vunpack.c.l.s4 1983009808
    %v77 = vunpack.c.0.s8 %v76
    %v78 = vlaneseq
    %v79 = vshrl.u32 %v78, 7
    %v80 = vsub.s32 %v77, %v79
    %v81 = vrot.slane %v72, %v80
    %v83 = vunpack.c.l.s4 1983009808
    %v84 = vunpack.c.0.s8 %v83
    %v85 = vlaneseq
    %v86 = vshrl.u32 %v85, 7
    %v87 = vsub.s32 %v84, %v86
    %v88 = vrot.slane %v74, %v87
    %v89 = vcombine.high %v81, %v81
    %v90 = vcombine.high %v88, %v88
    %v91 = vcombine.high %v73, %v73
    %v93 = vunpack.c.l.s4 1983009808
    %v94 = vunpack.c.0.s8 %v93
    %v95 = vlaneseq
    %v96 = vshrl.u32 %v95, 7
    %v97 = vsub.s32 %v94, %v96
    %v98 = vrot.slane %v73, %v97
    %v100 = vunpack.c.l.s4 1983009808
    %v101 = vunpack.c.0.s8 %v100
    %v102 = vlaneseq
    %v103 = vshrl.u32 %v102, 7
    %v104 = vsub.s32 %v101, %v103
    %v105 = vrot.slane %v91, %v104
    %v106 = vcombine.high %v98, %v98
    %v107 = vcombine.high %v105, %v105
    %v108 = vpack.c.b16 %v81, %v81
    %v109 = vpack.c.b8 %v108, %v108
    %v110 = vpack.c.b16 %v89, %v89
    %v111 = vpack.c.b8 %v110, %v110
    %v112 = vpack.c.b16 %v88, %v88
    %v113 = vpack.c.b8 %v112, %v112
    %v114 = vpack.c.b16 %v90, %v90
    %v115 = vpack.c.b8 %v114, %v114
    %v116 = vpack.c.b16 %v98, %v98
    %v117 = vpack.c.b8 %v116, %v116
    %v118 = vpack.c.b16 %v106, %v106
    %v119 = vpack.c.b8 %v118, %v118
    %v120 = vpack.c.b16 %v105, %v105
    %v121 = vpack.c.b8 %v120, %v120
    %v122 = vpack.c.b16 %v107, %v107
    %v123 = vpack.c.b8 %v122, %v122
    %v124 = vcombine.low %v109, %v111
    %v125 = vcombine.low %v113, %v115
    %v126 = vcombine.low %v117, %v119
    %v127 = vcombine.low %v121, %v123
    %v129 = vunpack.c.l.s4 1966171168
    %v130 = vunpack.c.0.s8 %v129
    %v131 = vlaneseq
    %v132 = vshrl.u32 %v131, 7
    %v133 = vsub.s32 %v130, %v132
    %v134 = vrot.slane %v124, %v133
    %v136 = vunpack.c.l.s4 1966171168
    %v137 = vunpack.c.0.s8 %v136
    %v138 = vlaneseq
    %v139 = vshrl.u32 %v138, 7
    %v140 = vsub.s32 %v137, %v139
    %v141 = vrot.slane %v125, %v140
    %v143 = vunpack.c.l.s4 1966171168
    %v144 = vunpack.c.0.s8 %v143
    %v145 = vlaneseq
    %v146 = vshrl.u32 %v145, 7
    %v147 = vsub.s32 %v144, %v146
    %v148 = vrot.slane %v126, %v147
    %v150 = vunpack.c.l.s4 1966171168
    %v151 = vunpack.c.0.s8 %v150
    %v152 = vlaneseq
    %v153 = vshrl.u32 %v152, 7
    %v154 = vsub.s32 %v151, %v153
    %v155 = vrot.slane %v127, %v154
    %v156 = vcombine.low %v134, %v141
    %v157 = vcombine.low %v148, %v155
    %v159 = vunpack.c.l.s4 1966171168
    %v160 = vunpack.c.0.s8 %v159
    %v161 = vlaneseq
    %v162 = vshrl.u32 %v161, 7
    %v163 = vsub.s32 %v160, %v162
    %v164 = vrot.slane %v156, %v163
    %v166 = vunpack.c.l.s4 1966171168
    %v167 = vunpack.c.0.s8 %v166
    %v168 = vlaneseq
    %v169 = vshrl.u32 %v168, 7
    %v170 = vsub.s32 %v167, %v169
    %v171 = vrot.slane %v157, %v170
    %v172 = vcombine.low %v164, %v171
    %vm173 = vcmask 1040384
    %vm174 = vsmask.f32 256
    %vm175 = vmand %vm173, %vm174
    %vm176 = vcmask 1041409
    %vm177 = vsmask.f32 1280
    %vm178 = vmand %vm176, %vm177
    %vm179 = vmor %vm178, %vm175
    %vm180 = vcmask 1042434
    %vm181 = vsmask.f32 2304
    %vm182 = vmand %vm180, %vm181
    %vm183 = vmor %vm182, %vm179
    %vm184 = vcmask 1043459
    %vm185 = vsmask.f32 3328
    %vm186 = vmand %vm184, %vm185
    %vm187 = vmor %vm186, %vm183
    %vm188 = vcmask 1044484
    %vm189 = vsmask.f32 4352
    %vm190 = vmand %vm188, %vm189
    %vm191 = vmor %vm190, %vm187
    %vm192 = vcmask 1045509
    %vm193 = vsmask.f32 5376
    %vm194 = vmand %vm192, %vm193
    %vm195 = vmor %vm194, %vm191
    %vm196 = vcmask 1046534
    %vm197 = vsmask.f32 6400
    %vm198 = vmand %vm196, %vm197
    %vm199 = vmor %vm198, %vm195
    %vm200 = vcmask 1047559
    %vm201 = vsmask.f32 7424
    %vm202 = vmand %vm200, %vm201
    %vm203 = vmor %vm202, %vm199
    %v204 = vld [vmem:[#allocation5] sm:$0xff]
    %v205 = vsel %vm203, %v172, %v204
    %206 = vst [vmem:[#allocation5] sm:$0xff] %v205
    %207 = vst [vmem:[#allocation6] sm:$0xff] %v70
    %208 = vst [vmem:[#allocation6 + $0x8] sm:$0xff] %v71
    // Predicated region
    $region10: #{tpu_custom_call.1} parent=1 // pred_check
      _
    $region11: #{tpu_custom_call.1} parent=1 // pred_check_branch
      %210 = sbr.rel (0) target = $region13
    $region12: #{tpu_custom_call.1} parent=1 // pred_region
      %s212 = ssub.s32 128, 128
      %213 = vsyncadd [#allocation4], %s212
      %s215 = sshll.u32 [#allocation5], 4
      %s216 = int_to_ptr.vmem [resolvable:$true] %s215
      %218 = dma.vmem_to_hbm [thread:$0]  %s216, 128, %s1, [#allocation4]
    $region13: #{tpu_custom_call.1} parent=1 // pred_fallthru
      _
    // Predicated region
    $region14: #{tpu_custom_call.1} parent=1 // pred_check
      _
    $region15: #{tpu_custom_call.1} parent=1 // pred_check_branch
      %220 = sbr.rel (0) target = $region17
    $region16: #{tpu_custom_call.1} parent=1 // pred_region
      %s222 = ssub.s32 256, 256
      %223 = vsyncadd [#allocation7], %s222
      %s225 = sshll.u32 [#allocation6], 4
      %s226 = int_to_ptr.vmem [resolvable:$true] %s225
      %228 = dma.vmem_to_hbm [thread:$0]  %s226, 256, %s2, [#allocation7]
    $region17: #{tpu_custom_call.1} parent=1 // pred_fallthru
      _
    // Predicated region
    $region18: #{tpu_custom_call.1} parent=1 // pred_check
      _
    $region19: #{tpu_custom_call.1} parent=1 // pred_check_branch
      %230 = sbr.rel (0) target = $region21
    $region20: #{tpu_custom_call.1} parent=1 // pred_region
      %231 = dma.done [#allocation4], 128
    $region21: #{tpu_custom_call.1} parent=1 // pred_fallthru
      _
    // Predicated region
    $region22: #{tpu_custom_call.1} parent=1 // pred_check
      _
    $region23: #{tpu_custom_call.1} parent=1 // pred_check_branch
      %233 = sbr.rel (0) target = $region25
    $region24: #{tpu_custom_call.1} parent=1 // pred_region
      %234 = dma.done [#allocation7], 256
    $region25: #{tpu_custom_call.1} parent=1 // pred_fallthru
      _
    %235 = vsyncpa [#allocation3], 1
    %236 = vsyncpa [#allocation4], 1
    %237 = vsyncpa [#allocation7], 1

</llo_original>
